<compile_context>
chip_gen: v5e
topology: v5e:2x2
jax: 0.10.0
libtpu: 0.0.40
codegen_flags: <defaults>
</compile_context>

<pallas_src>
import functools

import jax
import jax.numpy as jnp
import numpy as np
from jax.experimental import pallas as pl
from jax.experimental.pallas import tpu as pltpu

_LANE = 128


def _round_up(x, m):
    return ((x + m - 1) // m) * m


def _make_critic_kernel(n_layers):
    """Fused MLP kernel for `n_layers` Linear layers.

    Ref order: (x, W1, b1, W2, b2, ..., Wn, bn, out)
    Weights are (in_features[_padded], out_features_padded); biases (1, out_pad) f32.
    """

    def kernel(*refs):
        x_ref = refs[0]
        out_ref = refs[-1]

        x = x_ref[...]
        idx = 1
        for layer in range(n_layers):
            w_ref, b_ref = refs[idx], refs[idx + 1]
            idx += 2
            x = (
                jnp.dot(
                    x.astype(w_ref.dtype),
                    w_ref[...],
                    preferred_element_type=jnp.float32,
                )
                + b_ref[...]
            )
            if layer < n_layers - 1:
                x = jnp.maximum(x, 0.0)  # ReLU on all but the final layer

        out_ref[...] = x.astype(out_ref.dtype)

    return kernel


def init_critic_params(key, input_size, output_size, hidden_layer_sizes=None):
    """Deterministic init matching nn.Linear default (uniform(-1/sqrt(fan_in), ..)).

    Returns a list of (W, b) with W shaped (out_features, in_features),
    i.e. PyTorch layout.
    """
    sizes = [input_size]
    if hidden_layer_sizes is not None:
        sizes += list(hidden_layer_sizes)
    sizes += [output_size]

    params = []
    for i in range(len(sizes) - 1):
        fan_in, fan_out = sizes[i], sizes[i + 1]
        key, kw, kb = jax.random.split(key, 3)
        bound = 1.0 / np.sqrt(fan_in)
        w = jax.random.uniform(kw, (fan_out, fan_in), jnp.float32, -bound, bound)
        b = jax.random.uniform(kb, (fan_out,), jnp.float32, -bound, bound)
        params.append((w, b))
    return params


def prepare_critic_params(params, compute_dtype=jnp.float32):
    """One-time prep (NOT per call): transpose weights to (in, out), zero-pad
    all output feature dims (and matching next-layer input dims) to multiples
    of 128 lanes, cast to the compute dtype (biases stay f32).

    W1 stays packed over the full concatenated input (state_dim + action_dim);
    the wrapper concatenates state/action before the kernel.

    Returns (kernel_params_tuple, out_dim).
    """
    kparams = []
    prev_pad = None  # padded input dim of the current layer (None = unpadded)
    for li, (w, b) in enumerate(params):
        out_f, in_f = w.shape
        out_pad = _round_up(out_f, _LANE)
        wt = jnp.asarray(w).T  # (in_f, out_f)
        in_pad = in_f if prev_pad is None else prev_pad
        wt = jnp.pad(wt, ((0, in_pad - in_f), (0, out_pad - out_f)))
        kparams.append(wt.astype(compute_dtype))
        kparams.append(
            jnp.pad(jnp.asarray(b), (0, out_pad - out_f)).reshape(1, -1).astype(jnp.float32)
        )
        prev_pad = out_pad

    out_dim = params[-1][0].shape[0]
    return tuple(kparams), out_dim


def _choose_batch_tiling(batch, target_tb=2048, min_split_batch=1024):
    """Balanced batch tiling.

    - Aim for tiles of ~`target_tb` rows (few grid steps; footprint at 2048
      rows is only a few MiB of VMEM on every TPU generation).
    - Balance rows across tiles so padding is < 8 rows per tile.
    - For large batches force >=2 grid steps so the "parallel" grid axis can be
      sharded across v7x's two TensorCores (no-op on v5e/v6e).
    Returns (tile_rows, padded_batch).
    """
    num_tiles = pl.cdiv(batch, target_tb)
    if num_tiles == 1 and batch >= min_split_batch:
        num_tiles = 2
    tb = _round_up(pl.cdiv(batch, num_tiles), 8)
    return tb, num_tiles * tb


@functools.partial(jax.jit, static_argnames=("out_dim",))
def critic_forward(state, action, kparams, out_dim):
    """Runs the CriticNN forward pass with a single fused, batch-tiled kernel."""
    kparams = tuple(kparams)
    batch = state.shape[0]
    n_layers = len(kparams) // 2
    out_pad = kparams[-1].shape[1]  # last bias (1, out_pad)

    # cat([state, action], dim=1) done once in the wrapper (tiny XLA op); the
    # kernel then runs one packed first-layer matmul.
    x = jnp.concatenate([state, action], axis=1).astype(jnp.float32)
    din = x.shape[1]

    tb, batch_pad = _choose_batch_tiling(batch)
    if batch_pad != batch:
        x = jnp.pad(x, ((0, batch_pad - batch), (0, 0)))

    grid = (batch_pad // tb,)

    def resident(shape):
        return pl.BlockSpec(shape, lambda i: (0, 0))  # stays VMEM-resident

    in_specs = [pl.BlockSpec((tb, din), lambda i: (i, 0))] + [
        resident(p.shape) for p in kparams
    ]
    out_specs = pl.BlockSpec((tb, out_pad), lambda i: (i, 0))

    # Advisory cost estimate so XLA schedules/overlaps this call sensibly.
    flops = 2 * int(batch_pad) * sum(
        int(kparams[j].shape[0]) * int(kparams[j].shape[1])
        for j in range(0, len(kparams), 2)
    )
    weight_bytes = sum(int(np.prod(p.shape)) * p.dtype.itemsize for p in kparams)
    act_bytes = int(batch_pad) * (din * 4 + int(out_pad) * 4)
    cost = pl.CostEstimate(
        flops=flops, transcendentals=0, bytes_accessed=weight_bytes + act_bytes
    )

    out = pl.pallas_call(
        _make_critic_kernel(n_layers),
        out_shape=jax.ShapeDtypeStruct((batch_pad, out_pad), jnp.float32),
        grid=grid,
        in_specs=in_specs,
        out_specs=out_specs,
        compiler_params=pltpu.CompilerParams(dimension_semantics=("parallel",)),
        cost_estimate=cost,
    )(x, *kparams)

    return out[:batch, :out_dim]


def _reference_forward(state, action, params):
    """Pure-JAX f32 reference mirroring the PyTorch forward."""
    x = jnp.concatenate([state, action], axis=1)
    for i, (w, b) in enumerate(params):
        x = x @ w.T + b
        if i < len(params) - 1:
            x = jax.nn.relu(x)
    return x


if __name__ == "__main__":
    # Small deterministic example: input_size = state_dim + action_dim.
    batch = 8
    state_dim = 12
    action_dim = 4
    input_size = state_dim + action_dim
    hidden_layer_sizes = [32, 32]
    output_size = 1

    key = jax.random.PRNGKey(0)
    k_state, k_action, k_params = jax.random.split(key, 3)
    state = jax.random.normal(k_state, (batch, state_dim), jnp.float32)
    action = jax.random.normal(k_action, (batch, action_dim), jnp.float32)

    params = init_critic_params(k_params, input_size, output_size, hidden_layer_sizes)
    kparams, out_dim = prepare_critic_params(params)

    out = jax.block_until_ready(critic_forward(state, action, kparams, out_dim=out_dim))
    ref = _reference_forward(state, action, params)
    # Generous tolerance to stay robust to MXU matmul pass configuration.
    np.testing.assert_allclose(np.asarray(out), np.asarray(ref), rtol=2e-2, atol=2e-2)

    # Also exercise the hidden_layer_sizes=None (single Linear, no ReLU) path.
    params1 = init_critic_params(k_params, input_size, output_size, None)
    kparams1, out_dim1 = prepare_critic_params(params1)
    out1 = jax.block_until_ready(
        critic_forward(state, action, kparams1, out_dim=out_dim1)
    )
    ref1 = _reference_forward(state, action, params1)
    np.testing.assert_allclose(np.asarray(out1), np.asarray(ref1), rtol=2e-2, atol=2e-2)

    print("KERNEL_OK")
</pallas_src>

<mosaic_0001>
module attributes {stable_mosaic.version = 11 : i64} {
  func.func @kernel(%arg0: i32, %arg1: memref<8x16xf32, #tpu.memory_space<vmem>>, %arg2: memref<16x128xf32, #tpu.memory_space<vmem>>, %arg3: memref<1x128xf32, #tpu.memory_space<vmem>>, %arg4: memref<128x128xf32, #tpu.memory_space<vmem>>, %arg5: memref<1x128xf32, #tpu.memory_space<vmem>>, %arg6: memref<128x128xf32, #tpu.memory_space<vmem>>, %arg7: memref<1x128xf32, #tpu.memory_space<vmem>>, %arg8: memref<8x128xf32, #tpu.memory_space<vmem>>) attributes {dimension_semantics = [#tpu.dimension_semantics<parallel>], iteration_bounds = array<i64: 1>, scalar_prefetch = 0 : i64, scratch_operands = 0 : i64, tpu.core_type = #tpu.core_type<tc>, window_params = [{transform_indices = @transform_0, window_bounds = array<i64: 8, 16>}, {pipeline_mode = #tpu.pipeline_mode<synchronous>, transform_indices = @transform_1, window_bounds = array<i64: 16, 128>}, {pipeline_mode = #tpu.pipeline_mode<synchronous>, transform_indices = @transform_2, window_bounds = array<i64: 1, 128>}, {pipeline_mode = #tpu.pipeline_mode<synchronous>, transform_indices = @transform_3, window_bounds = array<i64: 128, 128>}, {pipeline_mode = #tpu.pipeline_mode<synchronous>, transform_indices = @transform_4, window_bounds = array<i64: 1, 128>}, {pipeline_mode = #tpu.pipeline_mode<synchronous>, transform_indices = @transform_5, window_bounds = array<i64: 128, 128>}, {pipeline_mode = #tpu.pipeline_mode<synchronous>, transform_indices = @transform_6, window_bounds = array<i64: 1, 128>}, {transform_indices = @transform_7, window_bounds = array<i64: 8, 128>}]} {
    %c0 = arith.constant 0 : index
    %c0_0 = arith.constant 0 : index
    %0 = vector.load %arg1[%c0, %c0_0] : memref<8x16xf32, #tpu.memory_space<vmem>>, vector<8x16xf32>
    %c0_1 = arith.constant 0 : index
    %c0_2 = arith.constant 0 : index
    %1 = vector.load %arg2[%c0_1, %c0_2] : memref<16x128xf32, #tpu.memory_space<vmem>>, vector<16x128xf32>
    %cst = arith.constant dense<0.000000e+00> : vector<8x128xf32>
    %2 = tpu.matmul %0, %1, %cst {dimension_numbers = #tpu.dot_dimension_numbers<[1], [0], [0], [1], [0, 0, 1, 1], [], []>} : vector<8x16xf32>, vector<16x128xf32>, vector<8x128xf32> -> vector<8x128xf32>
    %c0_3 = arith.constant 0 : index
    %c0_4 = arith.constant 0 : index
    %3 = vector.load %arg3[%c0_3, %c0_4] : memref<1x128xf32, #tpu.memory_space<vmem>>, vector<1x128xf32>
    %4 = vector.broadcast %3 : vector<1x128xf32> to vector<8x128xf32>
    %5 = arith.addf %2, %4 : vector<8x128xf32>
    %cst_5 = arith.constant 0.000000e+00 : f32
    %6 = vector.broadcast %cst_5 : f32 to vector<8x128xf32>
    %7 = arith.maximumf %5, %6 : vector<8x128xf32>
    %c0_6 = arith.constant 0 : index
    %c0_7 = arith.constant 0 : index
    %8 = vector.load %arg4[%c0_6, %c0_7] : memref<128x128xf32, #tpu.memory_space<vmem>>, vector<128x128xf32>
    %cst_8 = arith.constant dense<0.000000e+00> : vector<8x128xf32>
    %9 = tpu.matmul %7, %8, %cst_8 {dimension_numbers = #tpu.dot_dimension_numbers<[1], [0], [0], [1], [0, 0, 1, 1], [], []>} : vector<8x128xf32>, vector<128x128xf32>, vector<8x128xf32> -> vector<8x128xf32>
    %c0_9 = arith.constant 0 : index
    %c0_10 = arith.constant 0 : index
    %10 = vector.load %arg5[%c0_9, %c0_10] : memref<1x128xf32, #tpu.memory_space<vmem>>, vector<1x128xf32>
    %11 = vector.broadcast %10 : vector<1x128xf32> to vector<8x128xf32>
    %12 = arith.addf %9, %11 : vector<8x128xf32>
    %cst_11 = arith.constant 0.000000e+00 : f32
    %13 = vector.broadcast %cst_11 : f32 to vector<8x128xf32>
    %14 = arith.maximumf %12, %13 : vector<8x128xf32>
    %c0_12 = arith.constant 0 : index
    %c0_13 = arith.constant 0 : index
    %15 = vector.load %arg6[%c0_12, %c0_13] : memref<128x128xf32, #tpu.memory_space<vmem>>, vector<128x128xf32>
    %cst_14 = arith.constant dense<0.000000e+00> : vector<8x128xf32>
    %16 = tpu.matmul %14, %15, %cst_14 {dimension_numbers = #tpu.dot_dimension_numbers<[1], [0], [0], [1], [0, 0, 1, 1], [], []>} : vector<8x128xf32>, vector<128x128xf32>, vector<8x128xf32> -> vector<8x128xf32>
    %c0_15 = arith.constant 0 : index
    %c0_16 = arith.constant 0 : index
    %17 = vector.load %arg7[%c0_15, %c0_16] : memref<1x128xf32, #tpu.memory_space<vmem>>, vector<1x128xf32>
    %18 = vector.broadcast %17 : vector<1x128xf32> to vector<8x128xf32>
    %19 = arith.addf %16, %18 : vector<8x128xf32>
    %c0_17 = arith.constant 0 : index
    %c0_18 = arith.constant 0 : index
    %20 = vector.load %arg8[%c0_17, %c0_18] : memref<8x128xf32, #tpu.memory_space<vmem>>, vector<8x128xf32>
    tpu.vector_store %arg8[%c0_17, %c0_18], %19 {strides = array<i32>} : memref<8x128xf32, #tpu.memory_space<vmem>>, vector<8x128xf32>,
    return
  }
  func.func @transform_0(%arg0: i32) -> (i32, i32) {
    %c0_i32 = arith.constant 0 : i32
    %c0_i32_0 = arith.constant 0 : i32
    return %arg0, %c0_i32 : i32, i32
  }
  func.func @transform_1(%arg0: i32) -> (i32, i32) {
    %c0_i32 = arith.constant 0 : i32
    %c0_i32_0 = arith.constant 0 : i32
    %c0_i32_1 = arith.constant 0 : i32
    return %c0_i32, %c0_i32_0 : i32, i32
  }
  func.func @transform_2(%arg0: i32) -> (i32, i32) {
    %c0_i32 = arith.constant 0 : i32
    %c0_i32_0 = arith.constant 0 : i32
    %c0_i32_1 = arith.constant 0 : i32
    return %c0_i32, %c0_i32_0 : i32, i32
  }
  func.func @transform_3(%arg0: i32) -> (i32, i32) {
    %c0_i32 = arith.constant 0 : i32
    %c0_i32_0 = arith.constant 0 : i32
    %c0_i32_1 = arith.constant 0 : i32
    return %c0_i32, %c0_i32_0 : i32, i32
  }
  func.func @transform_4(%arg0: i32) -> (i32, i32) {
    %c0_i32 = arith.constant 0 : i32
    %c0_i32_0 = arith.constant 0 : i32
    %c0_i32_1 = arith.constant 0 : i32
    return %c0_i32, %c0_i32_0 : i32, i32
  }
  func.func @transform_5(%arg0: i32) -> (i32, i32) {
    %c0_i32 = arith.constant 0 : i32
    %c0_i32_0 = arith.constant 0 : i32
    %c0_i32_1 = arith.constant 0 : i32
    return %c0_i32, %c0_i32_0 : i32, i32
  }
  func.func @transform_6(%arg0: i32) -> (i32, i32) {
    %c0_i32 = arith.constant 0 : i32
    %c0_i32_0 = arith.constant 0 : i32
    %c0_i32_1 = arith.constant 0 : i32
    return %c0_i32, %c0_i32_0 : i32, i32
  }
  func.func @transform_7(%arg0: i32) -> (i32, i32) {
    %c0_i32 = arith.constant 0 : i32
    %c0_i32_0 = arith.constant 0 : i32
    return %arg0, %c0_i32 : i32, i32
  }
}

</mosaic_0001>

<llo_original>
// kernel: critic_forward.1
$region0: #{critic_forward.1}
  #allocation0 [shape = 'u32[]', space=smem, size = 0x4, offset = 0x4, fixed_abs, tag = 'smem constant byte address 0x4 - core index']
  #allocation1 [shape = 'u32[72,128]{1,0:T(1,128)}', space=vmem, size = 0x9000, scoped, tag = 'internal scratch']
  %s0 = inlined_call_operand.vmem [shape: f32[8,16], index: 0, kind: input, shape index: {}]
  %s1 = inlined_call_operand.vmem [shape: f32[16,128], index: 1, kind: input, shape index: {}]
  %s2 = inlined_call_operand.vmem [shape: f32[1,128], index: 2, kind: input, shape index: {}]
  %s3 = inlined_call_operand.hbm [shape: f32[128,128], index: 3, kind: input, shape index: {}]
  %s4 = inlined_call_operand.vmem [shape: f32[1,128], index: 4, kind: input, shape index: {}]
  %s5 = inlined_call_operand.hbm [shape: f32[128,128], index: 5, kind: input, shape index: {}]
  %s6 = inlined_call_operand.vmem [shape: f32[1,128], index: 6, kind: input, shape index: {}]
  %s7 = inlined_call_operand.vmem [shape: f32[8,128], index: 7, kind: output, shape index: {}]
  %s8 = sld [smem:[#allocation0]]
  $region46: #{critic_forward.1} parent=0
    _
  %s10 = ssub.s32 1, %s8
  %s11 = scalar_select 0, %s10, %s8
  $region1: #{critic_forward.1} parent=0
    #allocation2 [shape = 'u8[65536]{0}', space=vmem, size = 0x10000, scoped, tag = 'input window, operand 3, single buffered']
    #allocation3 [shape = 's32[1]{0}', space=sflag, size = 0x4, scoped, tag = 'scoped memory for critic_forward.1']
    #allocation4 [shape = 'u8[65536]{0}', space=vmem, size = 0x10000, scoped, tag = 'input window, operand 5, single buffered']
    #allocation5 [shape = 's32[1]{0}', space=sflag, size = 0x4, scoped, tag = 'scoped memory for critic_forward.1']
    %12 = vsyncpa [#allocation3], 0
    %13 = vsyncpa [#allocation5], 0
    // Predicated region
    $region2: #{critic_forward.1} parent=1 // pred_check
      _
    $region3: #{critic_forward.1} parent=1 // pred_check_branch
      %15 = sbr.rel (0) target = $region5
    $region4: #{critic_forward.1} parent=1 // pred_region
      _
    $region5: #{critic_forward.1} parent=1 // pred_fallthru
      _
    // Predicated region
    $region6: #{critic_forward.1} parent=1 // pred_check
      _
    $region7: #{critic_forward.1} parent=1 // pred_check_branch
      %17 = sbr.rel (0) target = $region9
    $region8: #{critic_forward.1} parent=1 // pred_region
      _
    $region9: #{critic_forward.1} parent=1 // pred_fallthru
      _
    // Predicated region
    $region10: #{critic_forward.1} parent=1 // pred_check
      _
    $region11: #{critic_forward.1} parent=1 // pred_check_branch
      %19 = sbr.rel (0) target = $region13
    $region12: #{critic_forward.1} parent=1 // pred_region
      _
    $region13: #{critic_forward.1} parent=1 // pred_fallthru
      _
    // Predicated region
    $region14: #{critic_forward.1} parent=1 // pred_check
      _
    $region15: #{critic_forward.1} parent=1 // pred_check_branch
      %21 = sbr.rel (0) target = $region17
    $region16: #{critic_forward.1} parent=1 // pred_region
      %23 = vsyncadd [#allocation3], 0
      %s24 = sshll.u32 %s3, 4
      %s25 = int_to_ptr.hbm [resolvable:$true] %s24
      %s26 = sshll.u32 [#allocation2], 4
      %s27 = int_to_ptr.vmem [resolvable:$true] %s26
      %32 = dma.hbm_to_vmem [thread:$0]  %s25, 2048, %s27, [#allocation3], 128, 128, 8
    $region17: #{critic_forward.1} parent=1 // pred_fallthru
      _
    // Predicated region
    $region18: #{critic_forward.1} parent=1 // pred_check
      _
    $region19: #{critic_forward.1} parent=1 // pred_check_branch
      %34 = sbr.rel (0) target = $region21
    $region20: #{critic_forward.1} parent=1 // pred_region
      _
    $region21: #{critic_forward.1} parent=1 // pred_fallthru
      _
    // Predicated region
    $region22: #{critic_forward.1} parent=1 // pred_check
      _
    $region23: #{critic_forward.1} parent=1 // pred_check_branch
      %36 = sbr.rel (0) target = $region25
    $region24: #{critic_forward.1} parent=1 // pred_region
      %38 = vsyncadd [#allocation5], 0
      %s39 = sshll.u32 %s5, 4
      %s40 = int_to_ptr.hbm [resolvable:$true] %s39
      %s41 = sshll.u32 [#allocation4], 4
      %s42 = int_to_ptr.vmem [resolvable:$true] %s41
      %47 = dma.hbm_to_vmem [thread:$0]  %s40, 2048, %s42, [#allocation5], 128, 128, 8
    $region25: #{critic_forward.1} parent=1 // pred_fallthru
      _
    // Predicated region
    $region26: #{critic_forward.1} parent=1 // pred_check
      _
    $region27: #{critic_forward.1} parent=1 // pred_check_branch
      %49 = sbr.rel (0) target = $region29
    $region28: #{critic_forward.1} parent=1 // pred_region
      _
    $region29: #{critic_forward.1} parent=1 // pred_fallthru
      _
    // Predicated region
    $region30: #{critic_forward.1} parent=1 // pred_check
      _
    $region31: #{critic_forward.1} parent=1 // pred_check_branch
      %51 = sbr.rel (0) target = $region33
    $region32: #{critic_forward.1} parent=1 // pred_region
      %53 = dma.done [#allocation3], 2048
    $region33: #{critic_forward.1} parent=1 // pred_fallthru
      _
    // Predicated region
    $region34: #{critic_forward.1} parent=1 // pred_check
      _
    $region35: #{critic_forward.1} parent=1 // pred_check_branch
      %55 = sbr.rel (0) target = $region37
    $region36: #{critic_forward.1} parent=1 // pred_region
      %57 = dma.done [#allocation5], 2048
    $region37: #{critic_forward.1} parent=1 // pred_fallthru
      _
    %v58 = vld [vmem:[%s0] sm:$0xff]
    %v59 = vld [vmem:[%s1] sm:$0xff]
    %v60 = vld [vmem:[%s1 + $0x8] sm:$0xff]
    %v61 = vld [vmem:[%s2] sm:$0x1]
    %v63 = vperm.slane %v61, 0
    %vm65 = vcmask 130048
    %v67 = vsel %vm65, %v58, 0
    %69 = vmatpush.msra.mxu0 0.0
    %70 = vmatpush.msra.mxu0 0.0
    %71 = vmatpush.msra.mxu0 0.0
    %72 = vmatpush.msra.mxu0 0.0
    %73 = vmatpush.msra.mxu0 0.0
    %74 = vmatpush.msra.mxu0 0.0
    %75 = vmatpush.msra.mxu0 0.0
    %76 = vmatpush.msra.mxu0 0.0
    %77 = vmatpush.msra.mxu0 0.0
    %78 = vmatpush.msra.mxu0 0.0
    %79 = vmatpush.msra.mxu0 0.0
    %80 = vmatpush.msra.mxu0 0.0
    %81 = vmatpush.msra.mxu0 0.0
    %82 = vmatpush.msra.mxu0 0.0
    %83 = vmatpush.msra.mxu0 %v60
    %84 = vmatpush.msra.mxu0 %v59
    %85 = vmatmul.f32.gmra.mxu0 %v67
    %v86 = vpop.f32.mrf.mxu0
    %v87 = vadd.f32 %v63, %v86
    %88 = vdwg.mxu0
    %v89 = vmax.f32 %v87, 0.0
    %v90 = vld [vmem:[#allocation2] sm:$0xff]
    %v91 = vld [vmem:[#allocation2 + $0x8] sm:$0xff]
    %v92 = vld [vmem:[#allocation2 + $0x10] sm:$0xff]
    %v93 = vld [vmem:[#allocation2 + $0x18] sm:$0xff]
    %v94 = vld [vmem:[#allocation2 + $0x20] sm:$0xff]
    %v95 = vld [vmem:[#allocation2 + $0x28] sm:$0xff]
    %v96 = vld [vmem:[#allocation2 + $0x30] sm:$0xff]
    %v97 = vld [vmem:[#allocation2 + $0x38] sm:$0xff]
    %v98 = vld [vmem:[#allocation2 + $0x40] sm:$0xff]
    %v99 = vld [vmem:[#allocation2 + $0x48] sm:$0xff]
    %v100 = vld [vmem:[#allocation2 + $0x50] sm:$0xff]
    %v101 = vld [vmem:[#allocation2 + $0x58] sm:$0xff]
    %v102 = vld [vmem:[#allocation2 + $0x60] sm:$0xff]
    %v103 = vld [vmem:[#allocation2 + $0x68] sm:$0xff]
    %v104 = vld [vmem:[#allocation2 + $0x70] sm:$0xff]
    %v105 = vld [vmem:[#allocation2 + $0x78] sm:$0xff]
    %v106 = vld [vmem:[%s4] sm:$0x1]
    %v108 = vperm.slane %v106, 0
    %110 = vmatpush.msra.mxu0 %v105
    %111 = vmatpush.msra.mxu0 %v104
    %112 = vmatpush.msra.mxu0 %v103
    %113 = vmatpush.msra.mxu0 %v102
    %114 = vmatpush.msra.mxu0 %v101
    %115 = vmatpush.msra.mxu0 %v100
    %116 = vmatpush.msra.mxu0 %v99
    %117 = vmatpush.msra.mxu0 %v98
    %118 = vmatpush.msra.mxu0 %v97
    %119 = vmatpush.msra.mxu0 %v96
    %120 = vmatpush.msra.mxu0 %v95
    %121 = vmatpush.msra.mxu0 %v94
    %122 = vmatpush.msra.mxu0 %v93
    %123 = vmatpush.msra.mxu0 %v92
    %124 = vmatpush.msra.mxu0 %v91
    %125 = vmatpush.msra.mxu0 %v90
    %126 = vmatmul.f32.gmra.mxu0 %v89
    %v127 = vpop.f32.mrf.mxu0
    %v128 = vadd.f32 %v108, %v127
    %129 = vdwg.mxu0
    %v130 = vmax.f32 %v128, 0.0
    %v131 = vld [vmem:[#allocation4] sm:$0xff]
    %v132 = vld [vmem:[#allocation4 + $0x8] sm:$0xff]
    %v133 = vld [vmem:[#allocation4 + $0x10] sm:$0xff]
    %v134 = vld [vmem:[#allocation4 + $0x18] sm:$0xff]
    %v135 = vld [vmem:[#allocation4 + $0x20] sm:$0xff]
    %v136 = vld [vmem:[#allocation4 + $0x28] sm:$0xff]
    %v137 = vld [vmem:[#allocation4 + $0x30] sm:$0xff]
    %v138 = vld [vmem:[#allocation4 + $0x38] sm:$0xff]
    %v139 = vld [vmem:[#allocation4 + $0x40] sm:$0xff]
    %v140 = vld [vmem:[#allocation4 + $0x48] sm:$0xff]
    %v141 = vld [vmem:[#allocation4 + $0x50] sm:$0xff]
    %v142 = vld [vmem:[#allocation4 + $0x58] sm:$0xff]
    %v143 = vld [vmem:[#allocation4 + $0x60] sm:$0xff]
    %v144 = vld [vmem:[#allocation4 + $0x68] sm:$0xff]
    %v145 = vld [vmem:[#allocation4 + $0x70] sm:$0xff]
    %v146 = vld [vmem:[#allocation4 + $0x78] sm:$0xff]
    %v147 = vld [vmem:[%s6] sm:$0x1]
    %v149 = vperm.slane %v147, 0
    %151 = vmatpush.msra.mxu0 %v146
    %152 = vmatpush.msra.mxu0 %v145
    %153 = vmatpush.msra.mxu0 %v144
    %154 = vmatpush.msra.mxu0 %v143
    %155 = vmatpush.msra.mxu0 %v142
    %156 = vmatpush.msra.mxu0 %v141
    %157 = vmatpush.msra.mxu0 %v140
    %158 = vmatpush.msra.mxu0 %v139
    %159 = vmatpush.msra.mxu0 %v138
    %160 = vmatpush.msra.mxu0 %v137
    %161 = vmatpush.msra.mxu0 %v136
    %162 = vmatpush.msra.mxu0 %v135
    %163 = vmatpush.msra.mxu0 %v134
    %164 = vmatpush.msra.mxu0 %v133
    %165 = vmatpush.msra.mxu0 %v132
    %166 = vmatpush.msra.mxu0 %v131
    %167 = vmatmul.f32.gmra.mxu0 %v130
    %v168 = vpop.f32.mrf.mxu0
    %v169 = vadd.f32 %v149, %v168
    %170 = vdwg.mxu0
    %171 = vst [vmem:[%s7] sm:$0xff] %v169
    // Predicated region
    $region38: #{critic_forward.1} parent=1 // pred_check
      _
    $region39: #{critic_forward.1} parent=1 // pred_check_branch
      %173 = sbr.rel (0) target = $region41
    $region40: #{critic_forward.1} parent=1 // pred_region
      _
    $region41: #{critic_forward.1} parent=1 // pred_fallthru
      _
    // Predicated region
    $region42: #{critic_forward.1} parent=1 // pred_check
      _
    $region43: #{critic_forward.1} parent=1 // pred_check_branch
      %175 = sbr.rel (0) target = $region45
    $region44: #{critic_forward.1} parent=1 // pred_region
      _
    $region45: #{critic_forward.1} parent=1 // pred_fallthru
      _
    %176 = vsyncpa [#allocation3], 1
    %177 = vsyncpa [#allocation5], 1

</llo_original>
